<compile_context>
chip_gen: v7x
topology: tpu7x:2x2x1
jax: 0.10.0
libtpu: 0.0.40
codegen_flags: <defaults>
</compile_context>

<pallas_src>
import functools

import numpy as np
import jax
import jax.numpy as jnp
from jax import lax
from jax.experimental import pallas as pl
from jax.experimental.pallas import tpu as pltpu


def _skce_kernel(pbar_ref, y_ref, h_ref, *maybe_reg,
                 n_classes: int, inv_neg_bw: float, with_reg: bool):
    """One grid step over a lane-dense tile of sample pairs.

    pbar_ref : (2, K, tile)  f32 p_bar of the even / odd pair member; samples on lanes
    y_ref    : (2, tile)     int32 labels of the even / odd pair member
    h_ref    : (1, tile)     output: per-pair kernel value h_i
    maybe_reg[0] : (2, tile) optional per-sample regulariser terms (NLL / BCE)
    """
    K = n_classes
    f32 = jnp.float32
    tile = pbar_ref.shape[-1]

    pbar_e = pbar_ref[0]                                            # (K, tile)
    pbar_o = pbar_ref[1]

    # total-variation distance between the paired convex combinations (short sublane reduce).
    d = 0.5 * jnp.sum(jnp.abs(pbar_e - pbar_o), axis=0, keepdims=True)   # (1, tile)
    gamma = jnp.exp(d * inv_neg_bw)     # EUP exp; -1/bw folded at trace time (no vector divide)

    # one_hot(y) - p_bar for both pair members (class id lives on the sublane axis).
    cls = lax.broadcasted_iota(jnp.int32, (K, tile), 0)
    oe = (cls == y_ref[0:1, :]).astype(f32)                              # (K, tile)
    oo = (cls == y_ref[1:2, :]).astype(f32)

    inner = jnp.sum((oe - pbar_e) * (oo - pbar_o), axis=0, keepdims=True)  # (1, tile)
    h_ref[...] = gamma * inner                                             # lane-dense store

    if with_reg:
        reg_ref = maybe_reg[0]
        if K > 2:
            # NLLLoss(log(p_bar + 1e-10), y): per-sample -log(p_bar[n, y_n] + 1e-10)
            sel_e = jnp.sum(oe * pbar_e, axis=0, keepdims=True)
            sel_o = jnp.sum(oo * pbar_o, axis=0, keepdims=True)
            reg_ref[...] = -jnp.log(jnp.concatenate([sel_e, sel_o], axis=0) + 1e-10)
        else:
            # BCELoss(p_bar[:, 1], y.float()) with torch's log clamp at -100.
            te = y_ref[0:1, :].astype(f32)
            to = y_ref[1:2, :].astype(f32)
            p1e = jnp.clip(pbar_e[1:2, :], 0.0, 1.0)
            p1o = jnp.clip(pbar_o[1:2, :], 0.0, 1.0)
            reg_e = -(te * jnp.maximum(jnp.log(p1e), -100.0)
                      + (1.0 - te) * jnp.maximum(jnp.log(1.0 - p1e), -100.0))
            reg_o = -(to * jnp.maximum(jnp.log(p1o), -100.0)
                      + (1.0 - to) * jnp.maximum(jnp.log(1.0 - p1o), -100.0))
            reg_ref[...] = jnp.concatenate([reg_e, reg_o], axis=0)         # one full-block store


def skce_loss(p_preds, weights_l, y, *, bw: float = 2.0, use_square: bool = True,
              lambda_bce: float = 0.0, target_block_bytes: int = 2 * 1024 * 1024):
    """Pallas-backed SKCELoss.forward.

    p_preds:   (N, M, K) probabilistic predictions (f32 or bf16)
    weights_l: (N, M)    mixture weights           (f32 or bf16)
    y:         (N,)      integer labels
    """
    N, M, K = p_preds.shape
    N2 = N // 2
    if N2 < 1:
        raise ValueError("need at least one pair of samples")
    f32 = jnp.float32

    # Ensemble pre-contraction in XLA (reads p_preds exactly once, f32 accumulation; the
    # result is a factor-M smaller stream than p_preds, so the kernel + its layout
    # transpose no longer re-read / re-write the dominant tensor).
    p_bar = jnp.einsum("nm,nmk->nk", weights_l, p_preds,
                       preferred_element_type=f32).astype(f32)              # (N, K)

    # Pair-split, lane-dense views for the kernel (small: only N*K elements):
    #   pbar_t[pair, k, i] = p_bar[2*i + pair, k],  y_t[pair, i] = y[2*i + pair]
    pbar_t = jnp.transpose(p_bar[:2 * N2].reshape(N2, 2, K), (1, 2, 0))      # (2, K, N2)
    y_t = jnp.transpose(y[:2 * N2].astype(jnp.int32).reshape(N2, 2), (1, 0))  # (2,  N2)

    # Tile selection:
    #   * target ~target_block_bytes of p_bar per grid step (amortise ~0.35us step overhead)
    #   * guarantee >= 2 grid steps when N2 > 256 so the "parallel" axis can shard across
    #     v7x's two TensorCores
    #   * keep the lane dim 128-aligned (ragged last tile is handled by masked writeback)
    if N2 <= 256:
        tile = N2
    else:
        bytes_per_pair = 2 * K * 4                                   # f32 p_bar block
        cap = max(128, ((target_block_bytes // bytes_per_pair) // 128) * 128)
        half = ((-(-N2 // 2)) + 127) // 128 * 128                    # roundup(ceil(N2/2), 128)
        tile = max(128, min(cap, half))
    grid = (pl.cdiv(N2, tile),)
    with_reg = lambda_bce > 0.0

    kernel = functools.partial(_skce_kernel, n_classes=K,
                               inv_neg_bw=-1.0 / float(bw), with_reg=with_reg)

    in_specs = [
        pl.BlockSpec((2, K, tile), lambda i: (0, 0, i)),
        pl.BlockSpec((2, tile), lambda i: (0, i)),
    ]
    out_shape = [jax.ShapeDtypeStruct((1, N2), f32)]
    out_specs = [pl.BlockSpec((1, tile), lambda i: (0, i))]
    if with_reg:
        out_shape.append(jax.ShapeDtypeStruct((2, N2), f32))
        out_specs.append(pl.BlockSpec((2, tile), lambda i: (0, i)))

    outs = pl.pallas_call(
        kernel,
        grid=grid,
        in_specs=in_specs,
        out_specs=tuple(out_specs),
        out_shape=tuple(out_shape),
        compiler_params=pltpu.CompilerParams(
            dimension_semantics=("parallel",),        # pairs are independent -> megacore / v7x 2-TC
            vmem_limit_bytes=32 * 1024 * 1024),
    )(pbar_t, y_t)

    # Global reduction in the wrapper: divide by the *global* pair count and square once.
    h = outs[0]                                      # (1, N2) per-pair kernel values
    loss = jnp.mean(h)
    if use_square:
        loss = loss * loss

    if with_reg:
        reg_sum = jnp.sum(outs[1])                   # (2, N2) per-sample reg terms
        count = 2 * N2
        if N % 2 == 1:
            # PyTorch's regulariser uses p_bar of *all* samples, incl. the unpaired last one.
            p_last = p_bar[-1]
            y_last = y[-1].astype(jnp.int32)
            if K > 2:
                reg_last = -jnp.log(p_last[y_last] + 1e-10)
            else:
                t = y_last.astype(f32)
                p1 = jnp.clip(p_last[1], 0.0, 1.0)
                reg_last = -(t * jnp.maximum(jnp.log(p1), -100.0)
                             + (1.0 - t) * jnp.maximum(jnp.log(1.0 - p1), -100.0))
            reg_sum = reg_sum + reg_last
            count += 1
        loss = loss + lambda_bce * (reg_sum / count)
    return loss


def skce_loss_ref(p_preds, weights_l, y, *, bw=2.0, use_square=True, lambda_bce=0.0):
    """Pure-JAX reference mirroring the PyTorch forward."""
    p_bar = jnp.sum(weights_l[:, :, None] * p_preds, axis=1)
    N, K = p_bar.shape
    N2 = N // 2
    pi = p_bar[0:2 * N2:2]
    pj = p_bar[1:2 * N2:2]
    yi = y[0:2 * N2:2]
    yj = y[1:2 * N2:2]
    d = 0.5 * jnp.sum(jnp.abs(pi - pj), axis=-1)
    gamma = jnp.exp(-d / bw)
    oi = jax.nn.one_hot(yi, K, dtype=p_bar.dtype)
    oj = jax.nn.one_hot(yj, K, dtype=p_bar.dtype)
    h = gamma * jnp.sum((oi - pi) * (oj - pj), axis=-1)
    loss = jnp.mean(h)
    if use_square:
        loss = loss ** 2
    if lambda_bce > 0.0:
        if K > 2:
            reg = -jnp.mean(jnp.log(p_bar[jnp.arange(N), y] + 1e-10))
        else:
            p1 = p_bar[:, 1]
            t = y.astype(p1.dtype)
            reg = -jnp.mean(t * jnp.maximum(jnp.log(p1), -100.0)
                            + (1 - t) * jnp.maximum(jnp.log(1 - p1), -100.0))
        loss = loss + lambda_bce * reg
    return loss


if __name__ == "__main__":
    key = jax.random.PRNGKey(0)

    def make_inputs(k, n, m, kk):
        k1, k2, k3 = jax.random.split(k, 3)
        p = jax.nn.softmax(jax.random.normal(k1, (n, m, kk)), axis=-1).astype(jnp.float32)
        w = jax.nn.softmax(jax.random.normal(k2, (n, m)), axis=-1).astype(jnp.float32)
        yy = jax.random.randint(k3, (n,), 0, kk, dtype=jnp.int32)
        return p, w, yy

    k0, k1, k2, k3 = jax.random.split(key, 4)

    # 1) base config: even N, no regulariser, f32
    p, w, yy = make_inputs(k0, 8, 4, 4)
    out = skce_loss(p, w, yy, bw=2.0, use_square=True, lambda_bce=0.0)
    jax.block_until_ready(out)
    ref = skce_loss_ref(p, w, yy, bw=2.0, use_square=True, lambda_bce=0.0)
    assert np.allclose(np.asarray(out), np.asarray(ref), rtol=1e-4, atol=1e-7), (out, ref)

    # 2) odd N + NLL regulariser (K > 2), exercises the unpaired-sample handling
    p, w, yy = make_inputs(k1, 9, 4, 5)
    out = skce_loss(p, w, yy, bw=1.5, use_square=True, lambda_bce=0.3)
    jax.block_until_ready(out)
    ref = skce_loss_ref(p, w, yy, bw=1.5, use_square=True, lambda_bce=0.3)
    assert np.allclose(np.asarray(out), np.asarray(ref), rtol=1e-4, atol=1e-6), (out, ref)

    # 3) binary case -> BCE regulariser (K == 2), no squaring
    p, w, yy = make_inputs(k2, 6, 3, 2)
    out = skce_loss(p, w, yy, bw=2.0, use_square=False, lambda_bce=0.5)
    jax.block_until_ready(out)
    ref = skce_loss_ref(p, w, yy, bw=2.0, use_square=False, lambda_bce=0.5)
    assert np.allclose(np.asarray(out), np.asarray(ref), rtol=1e-4, atol=1e-6), (out, ref)

    # 4) multi-step grid with a ragged last tile: 300 pairs -> tile=256, grid=(2,)
    p, w, yy = make_inputs(k3, 600, 4, 4)
    out = skce_loss(p, w, yy, bw=2.0, use_square=True, lambda_bce=0.0)
    jax.block_until_ready(out)
    ref = skce_loss_ref(p, w, yy, bw=2.0, use_square=True, lambda_bce=0.0)
    assert np.allclose(np.asarray(out), np.asarray(ref), rtol=1e-4, atol=1e-6), (out, ref)

    # 5) bf16 inputs (mem-bound win on v5e/v6e); p_bar is accumulated in f32
    p, w, yy = make_inputs(k0, 8, 4, 4)
    p_bf, w_bf = p.astype(jnp.bfloat16), w.astype(jnp.bfloat16)
    out = skce_loss(p_bf, w_bf, yy, bw=2.0, use_square=True, lambda_bce=0.0)
    jax.block_until_ready(out)
    ref = skce_loss_ref(p_bf.astype(jnp.float32), w_bf.astype(jnp.float32), yy,
                        bw=2.0, use_square=True, lambda_bce=0.0)
    assert np.allclose(np.asarray(out), np.asarray(ref), rtol=1e-3, atol=1e-6), (out, ref)

    print("KERNEL_OK")
</pallas_src>

<mosaic_0001>
module attributes {stable_mosaic.version = 11 : i64} {
  func.func @_skce_kernel(%arg0: i32, %arg1: memref<2x4x4xf32, #tpu.memory_space<vmem>>, %arg2: memref<2x4xi32, #tpu.memory_space<vmem>>, %arg3: memref<1x4xf32, #tpu.memory_space<vmem>>) attributes {dimension_semantics = [#tpu.dimension_semantics<parallel>], iteration_bounds = array<i64: 1>, scalar_prefetch = 0 : i64, scratch_operands = 0 : i64, tpu.core_type = #tpu.core_type<tc>, window_params = [{transform_indices = @transform_0, window_bounds = array<i64: 2, 4, 4>}, {transform_indices = @transform_1, window_bounds = array<i64: 2, 4>}, {transform_indices = @transform_2, window_bounds = array<i64: 1, 4>}]} {
    %c0 = arith.constant 0 : index
    %c0_0 = arith.constant 0 : index
    %c0_1 = arith.constant 0 : index
    %0 = vector.load %arg1[%c0, %c0_0, %c0_1] : memref<2x4x4xf32, #tpu.memory_space<vmem>>, vector<1x4x4xf32>
    %1 = vector.shape_cast %0 : vector<1x4x4xf32> to vector<4x4xf32>
    %c1 = arith.constant 1 : index
    %c0_2 = arith.constant 0 : index
    %c0_3 = arith.constant 0 : index
    %2 = vector.load %arg1[%c1, %c0_2, %c0_3] : memref<2x4x4xf32, #tpu.memory_space<vmem>>, vector<1x4x4xf32>
    %3 = vector.shape_cast %2 : vector<1x4x4xf32> to vector<4x4xf32>
    %4 = arith.subf %1, %3 : vector<4x4xf32>
    %5 = math.absf %4 : vector<4x4xf32>
    %cst = arith.constant dense<0.000000e+00> : vector<4xf32>
    %6 = vector.multi_reduction <add>, %5, %cst [0] : vector<4x4xf32> to vector<4xf32>
    %7 = vector.shape_cast %6 : vector<4xf32> to vector<1x4xf32>
    %cst_4 = arith.constant 5.000000e-01 : f32
    %8 = vector.broadcast %cst_4 : f32 to vector<1x4xf32>
    %9 = arith.mulf %8, %7 : vector<1x4xf32>
    %cst_5 = arith.constant -5.000000e-01 : f32
    %10 = vector.broadcast %cst_5 : f32 to vector<1x4xf32>
    %11 = arith.mulf %9, %10 : vector<1x4xf32>
    %12 = math.exp %11 : vector<1x4xf32>
    %13 = tpu.iota {dimensions = array<i32: 0>} : vector<4x4xi32>
    %c0_6 = arith.constant 0 : index
    %c0_7 = arith.constant 0 : index
    %14 = vector.load %arg2[%c0_6, %c0_7] : memref<2x4xi32, #tpu.memory_space<vmem>>, vector<1x4xi32>
    %15 = vector.broadcast %14 : vector<1x4xi32> to vector<4x4xi32>
    %16 = arith.cmpi eq, %13, %15 : vector<4x4xi32>
    %17 = arith.extui %16 : vector<4x4xi1> to vector<4x4xi32>
    %18 = arith.sitofp %17 : vector<4x4xi32> to vector<4x4xf32>
    %c1_8 = arith.constant 1 : index
    %c0_9 = arith.constant 0 : index
    %19 = vector.load %arg2[%c1_8, %c0_9] : memref<2x4xi32, #tpu.memory_space<vmem>>, vector<1x4xi32>
    %20 = vector.broadcast %19 : vector<1x4xi32> to vector<4x4xi32>
    %21 = arith.cmpi eq, %13, %20 : vector<4x4xi32>
    %22 = arith.extui %21 : vector<4x4xi1> to vector<4x4xi32>
    %23 = arith.sitofp %22 : vector<4x4xi32> to vector<4x4xf32>
    %24 = arith.subf %18, %1 : vector<4x4xf32>
    %25 = arith.subf %23, %3 : vector<4x4xf32>
    %26 = arith.mulf %24, %25 : vector<4x4xf32>
    %cst_10 = arith.constant dense<0.000000e+00> : vector<4xf32>
    %27 = vector.multi_reduction <add>, %26, %cst_10 [0] : vector<4x4xf32> to vector<4xf32>
    %28 = vector.shape_cast %27 : vector<4xf32> to vector<1x4xf32>
    %29 = arith.mulf %12, %28 : vector<1x4xf32>
    %c0_11 = arith.constant 0 : index
    %c0_12 = arith.constant 0 : index
    %30 = vector.load %arg3[%c0_11, %c0_12] : memref<1x4xf32, #tpu.memory_space<vmem>>, vector<1x4xf32>
    tpu.vector_store %arg3[%c0_11, %c0_12], %29 {strides = array<i32>} : memref<1x4xf32, #tpu.memory_space<vmem>>, vector<1x4xf32>,
    return
  }
  func.func @transform_0(%arg0: i32) -> (i32, i32, i32) {
    %c0_i32 = arith.constant 0 : i32
    %c0_i32_0 = arith.constant 0 : i32
    %c0_i32_1 = arith.constant 0 : i32
    return %c0_i32, %c0_i32_0, %arg0 : i32, i32, i32
  }
  func.func @transform_1(%arg0: i32) -> (i32, i32) {
    %c0_i32 = arith.constant 0 : i32
    %c0_i32_0 = arith.constant 0 : i32
    return %c0_i32, %arg0 : i32, i32
  }
  func.func @transform_2(%arg0: i32) -> (i32, i32) {
    %c0_i32 = arith.constant 0 : i32
    %c0_i32_0 = arith.constant 0 : i32
    return %c0_i32, %arg0 : i32, i32
  }
}

</mosaic_0001>

<llo_original>
// kernel: tpu_custom_call.1
$region0: #{tpu_custom_call.1}
  #allocation0 [shape = 'u32[]', space=smem, size = 0x4, offset = 0x4, fixed_abs, tag = 'smem constant byte address 0x4 - core index']
  #allocation1 [shape = 'u32[144,128]{1,0:T(1,128)}', space=vmem, size = 0x12000, scoped, tag = 'internal scratch']
  %s0 = inlined_call_operand.hbm [shape: f32[2,4,4], index: 0, kind: input, shape index: {}]
  %s1 = inlined_call_operand.vmem [shape: s32[2,4], index: 1, kind: input, shape index: {}]
  %s2 = inlined_call_operand.hbm [shape: f32[1,4], index: 2, kind: output, shape index: {}]
  %s3 = sld [smem:[#allocation0]]
  $region22: #{tpu_custom_call.1} parent=0
    _
  %s5 = ssub.s32 1, %s3
  %s6 = scalar_select 0, %s5, %s3
  $region1: #{tpu_custom_call.1} parent=0
    #allocation2 [shape = 'u8[4096]{0}', space=vmem, size = 0x1000, scoped, tag = 'input window, operand 0, single buffered']
    #allocation3 [shape = 's32[1]{0}', space=sflag, size = 0x4, scoped, tag = 'scoped memory for tpu_custom_call.1']
    #allocation4 [shape = 's32[1]{0}', space=sflag, size = 0x4, scoped, tag = 'scoped memory for tpu_custom_call.1']
    #allocation5 [shape = 'u8[512]{0}', space=vmem, size = 0x400, scoped, tag = 'output window, operand 0, single buffered']
    %7 = vsyncpa [#allocation3], 0
    %8 = vsyncpa [#allocation4], 0
    // Predicated region
    $region2: #{tpu_custom_call.1} parent=1 // pred_check
      _
    $region3: #{tpu_custom_call.1} parent=1 // pred_check_branch
      %10 = sbr.rel (0) target = $region5
    $region4: #{tpu_custom_call.1} parent=1 // pred_region
      %s12 = ssub.s32 128, 128
      %13 = vsyncadd [#allocation3], %s12
      %s14 = sshll.u32 [#allocation2], 4
      %s15 = int_to_ptr.vmem [resolvable:$true] %s14
      %20 = dma.hbm_to_vmem [thread:$0]  %s0, 128, %s15, [#allocation3], 64, 64, 4
    $region5: #{tpu_custom_call.1} parent=1 // pred_fallthru
      _
    // Predicated region
    $region6: #{tpu_custom_call.1} parent=1 // pred_check
      _
    $region7: #{tpu_custom_call.1} parent=1 // pred_check_branch
      %22 = sbr.rel (0) target = $region9
    $region8: #{tpu_custom_call.1} parent=1 // pred_region
      _
    $region9: #{tpu_custom_call.1} parent=1 // pred_fallthru
      _
    // Predicated region
    $region10: #{tpu_custom_call.1} parent=1 // pred_check
      _
    $region11: #{tpu_custom_call.1} parent=1 // pred_check_branch
      %24 = sbr.rel (0) target = $region13
    $region12: #{tpu_custom_call.1} parent=1 // pred_region
      %25 = dma.done [#allocation3], 128
    $region13: #{tpu_custom_call.1} parent=1 // pred_fallthru
      _
    %v26 = vld [vmem:[#allocation2] sm:$0xf]
    %s27 = scalar_lea.vmem [#allocation2], 4
    %v28 = vld [vmem:[%s27] sm:$0xf]
    %v29 = vsub.f32 %v26, %v28
    %v30 = vand.u32 2147483647, %v29
    %vm31 = vcmask 27648
    %v32 = vsel %vm31, %v30, 0.0
    %v33 = vrot.slane %v32, 4
    %v34 = vadd.f32 %v32, %v33
    %v35 = vrot.slane %v34, 2
    %v36 = vadd.f32 %v34, %v35
    %v37 = vrot.slane %v36, 1
    %v38 = vadd.f32 %v36, %v37
    %v39 = vmul.f32 %v38, 0.5
    %v40 = vmul.f32 %v39, -0.5
    %v41 = vmul.f32 %v40, 1.442695
    %v42 = vpow.pop %v41
    %v43 = vlaneseq
    %v44 = vshrl.u32 %v43, 7
    %v45 = vld [vmem:[%s1] sm:$0x1]
    %v46 = vlaneseq
    %v47 = vshrl.u32 %v46, 7
    %v48 = vsub.s32 0, %v47
    %v49 = vrot.slane %v45, %v48
    %vm50 = vcmp.eq.s32.totalorder %v44, %v49
    %v51 = vsel %vm50, 1, 0
    %v52 = vcvt.s32.f32 %v51
    %v53 = vld [vmem:[%s1 + $0x1] sm:$0x1]
    %v54 = vlaneseq
    %v55 = vshrl.u32 %v54, 7
    %v56 = vsub.s32 0, %v55
    %v57 = vrot.slane %v53, %v56
    %vm58 = vcmp.eq.s32.totalorder %v44, %v57
    %v59 = vsel %vm58, 1, 0
    %v60 = vcvt.s32.f32 %v59
    %v61 = vsub.f32 %v52, %v26
    %v62 = vsub.f32 %v60, %v28
    %v63 = vmul.f32 %v61, %v62
    %v64 = vsel %vm31, %v63, 0.0
    %v65 = vrot.slane %v64, 4
    %v66 = vadd.f32 %v64, %v65
    %v67 = vrot.slane %v66, 2
    %v68 = vadd.f32 %v66, %v67
    %v69 = vrot.slane %v68, 1
    %v70 = vadd.f32 %v68, %v69
    %v71 = vmul.f32 %v42, %v70
    %vm72 = vcmask 24576
    %73 = vst.msk [vmem:[#allocation5] sm:$0x1] %vm72, %v71
    // Predicated region
    $region14: #{tpu_custom_call.1} parent=1 // pred_check
      _
    $region15: #{tpu_custom_call.1} parent=1 // pred_check_branch
      %75 = sbr.rel (0) target = $region17
    $region16: #{tpu_custom_call.1} parent=1 // pred_region
      %s77 = ssub.s32 16, 16
      %78 = vsyncadd [#allocation4], %s77
      %s80 = sshll.u32 [#allocation5], 4
      %s81 = int_to_ptr.vmem [resolvable:$true] %s80
      %83 = dma.vmem_to_hbm [thread:$0]  %s81, 16, %s2, [#allocation4]
    $region17: #{tpu_custom_call.1} parent=1 // pred_fallthru
      _
    // Predicated region
    $region18: #{tpu_custom_call.1} parent=1 // pred_check
      _
    $region19: #{tpu_custom_call.1} parent=1 // pred_check_branch
      %85 = sbr.rel (0) target = $region21
    $region20: #{tpu_custom_call.1} parent=1 // pred_region
      %86 = dma.done [#allocation4], 16
    $region21: #{tpu_custom_call.1} parent=1 // pred_fallthru
      _
    %87 = vsyncpa [#allocation3], 1
    %88 = vsyncpa [#allocation4], 1

</llo_original>
